<compile_context>
chip_gen: v7x
topology: tpu7x:2x2x1
jax: 0.10.0
libtpu: 0.0.40
codegen_flags: <defaults>
</compile_context>

<pallas_src>
import math

import jax
import jax.numpy as jnp
from jax.experimental import pallas as pl
from jax.experimental.pallas import tpu as pltpu

_SUBLANE = 8
_LANE = 128


def _round_up(v, m):
    return -(-v // m) * m


def _glorot(key, shape):
    """Deterministic Glorot-uniform init (matches the `glorot` helper)."""
    limit = math.sqrt(6.0 / (shape[0] + shape[1]))
    return jax.random.uniform(key, shape, jnp.float32, -limit, limit)


def _choose_tiles(B, S, D, itemsize):
    """Pick (tb, ts) = (batch tile, node-chunk tile).

    Heuristic: give the fused matmul >= 512 rows per grid step (fills the MXU
    M dim and amortizes ~0.35us/step overhead) while keeping one (tb, ts, D)
    x block around <= 4 MiB so double-buffered inputs plus the resident fused
    weight fit v7x's 64 MiB VMEM (and the raised scoped limit on v5e).
    ts is always a multiple of 8 (sublane rule for the (tb, ts, *) blocks and
    for clean (tb*ts, D) reshapes); tb is a multiple of 8 or equals B so the
    (tb, D) output block stays sublane-aligned.
    """
    budget = 4 * 1024 * 1024                      # bytes per x block
    s8 = _round_up(S, _SUBLANE)
    ts_cap = max(_SUBLANE,
                 (budget // (_SUBLANE * D * itemsize)) // _SUBLANE * _SUBLANE)
    ts = s8 if s8 <= ts_cap else min(512, ts_cap)

    tb_mxu = max(1, 512 // ts)                    # rows to fill MXU M dim
    tb_max = max(1, budget // (ts * D * itemsize))
    tb = min(max(tb_mxu, _SUBLANE), tb_max, B)
    if tb >= B:
        return B, ts
    tb = max(_SUBLANE, (tb // _SUBLANE) * _SUBLANE)
    return (B, ts) if tb >= B else (tb, ts)


def readout_kernel(x_ref, mask_ref, w_ref, b_ref, out_ref,
                   sum_acc, max_acc, n_acc):
    """One grid step: tb graphs x ts nodes; accumulate over node chunks."""
    s_step = pl.program_id(1)

    @pl.when(s_step == 0)
    def _init():
        sum_acc[...] = jnp.zeros_like(sum_acc)
        max_acc[...] = jnp.full_like(max_acc, -jnp.inf)
        n_acc[...] = jnp.zeros_like(n_acc)

    tb, ts, d = x_ref.shape

    # Single fused MXU pass: columns [0, d) -> emb projection, column d ->
    # attention logit, remaining (zero) columns are lane padding.
    x2 = x_ref[...].reshape(tb * ts, d)
    h = jnp.dot(x2, w_ref[...], preferred_element_type=jnp.float32) + b_ref[...]
    emb = jnp.maximum(h[:, :d], 0.0).reshape(tb, ts, d)      # relu(x W_emb + b)
    att = jax.nn.sigmoid(h[:, d:d + 1]).reshape(tb, ts, 1)   # sigmoid gate

    m = mask_ref[...]                                        # (tb, ts, 1)
    g = m * att * emb                                        # (tb, ts, d)

    sum_acc[...] += jnp.sum(g, axis=1)                                   # (tb,d)
    max_acc[...] = jnp.maximum(
        max_acc[...], jnp.max(g + (m - 1.0) * 1000000000.0, axis=1))    # (tb,d)
    n_acc[...] += jnp.sum(m, axis=1)                                     # (tb,1)

    @pl.when(s_step == pl.num_programs(1) - 1)
    def _finalize():
        out_ref[...] = (sum_acc[...] / n_acc[...]
                        + max_acc[...]).astype(out_ref.dtype)


def readout_forward(x, mask, att_weight, emb_weight, att_bias, emb_bias,
                    *, compute_dtype=jnp.float32, tiles=None):
    """x: [B,S,D] f32, mask: [B,S,1] f32.  Returns g: [B,D] f32.

    compute_dtype=jnp.bfloat16 casts x / fused weights to bf16 for the MXU
    (f32 accumulation kept via preferred_element_type) -- faster + half the
    DMA bytes, at bf16 input precision.
    """
    B, S, D = x.shape
    itemsize = jnp.dtype(compute_dtype).itemsize
    tb, ts = tiles if tiles is not None else _choose_tiles(B, S, D, itemsize)
    bp = _round_up(B, tb)
    sp = _round_up(S, ts)

    # Fused parameter block [W_emb | w_att | 0-pad-to-128-lane-multiple]:
    # removes the degenerate 1-wide attention matmul (one MXU pass, not two).
    wc = _round_up(D + 1, _LANE)
    w_fused = jnp.zeros((D, wc), jnp.float32)
    w_fused = w_fused.at[:, :D].set(emb_weight)
    w_fused = w_fused.at[:, D].set(att_weight[:, 0])
    b_fused = jnp.zeros((1, wc), jnp.float32)
    b_fused = b_fused.at[0, :D].set(emb_bias)
    b_fused = b_fused.at[0, D].set(att_bias[0])

    x_p, mask_p = x, mask
    if bp != B or sp != S:
        x_p = jnp.pad(x, ((0, bp - B), (0, sp - S), (0, 0)))
        mask_p = jnp.pad(mask, ((0, bp - B), (0, sp - S), (0, 0)))
        if bp != B:
            # Padded (discarded) batch rows: keep N > 0 so no inf/NaN work.
            mask_p = mask_p.at[B:, 0, 0].set(1.0)

    x_p = x_p.astype(compute_dtype)
    w_fused = w_fused.astype(compute_dtype)

    grid = (bp // tb, sp // ts)

    out = pl.pallas_call(
        readout_kernel,
        out_shape=jax.ShapeDtypeStruct((bp, D), jnp.float32),
        grid_spec=pltpu.PrefetchScalarGridSpec(
            num_scalar_prefetch=0,
            grid=grid,
            in_specs=[
                pl.BlockSpec((tb, ts, D), lambda b, s: (b, s, 0)),  # x
                pl.BlockSpec((tb, ts, 1), lambda b, s: (b, s, 0)),  # mask
                pl.BlockSpec((D, wc), lambda b, s: (0, 0)),         # fused W
                pl.BlockSpec((1, wc), lambda b, s: (0, 0)),         # fused bias
            ],
            out_specs=pl.BlockSpec((tb, D), lambda b, s: (b, 0)),
            scratch_shapes=[
                pltpu.VMEM((tb, D), jnp.float32),   # running masked sum
                pltpu.VMEM((tb, D), jnp.float32),   # running masked max
                pltpu.VMEM((tb, 1), jnp.float32),   # running node count N
            ],
        ),
        compiler_params=pltpu.CompilerParams(
            dimension_semantics=("parallel", "arbitrary"),
            vmem_limit_bytes=48 * 1024 * 1024,
        ),
    )(x_p, mask_p, w_fused, b_fused)
    return out[:B]


def readout_reference(x, mask, att_weight, emb_weight, att_bias, emb_bias):
    """Pure-JAX reference of the PyTorch forward."""
    att = jax.nn.sigmoid(jnp.matmul(x, att_weight) + att_bias)
    emb = jax.nn.relu(jnp.matmul(x, emb_weight) + emb_bias)
    N = jnp.sum(mask, axis=1)
    M = (mask - 1.0) * 1000000000.0
    g = mask * att * emb
    g = jnp.sum(g, axis=1) / N + jnp.max(g + M, axis=1)
    return g


if __name__ == "__main__":
    key = jax.random.PRNGKey(0)
    k_x1, k_x2, k_aw, k_ew = jax.random.split(key, 4)

    D = 32
    att_weight = _glorot(k_aw, (D, 1))
    emb_weight = _glorot(k_ew, (D, D))
    att_bias = jnp.zeros((1,), jnp.float32)
    emb_bias = jnp.zeros((D,), jnp.float32)

    def make_inputs(k, B, S, lengths):
        x = jax.random.normal(k, (B, S, D), jnp.float32)
        node_ids = jnp.arange(S)[None, :, None]                      # (1,S,1)
        mask = (node_ids < jnp.asarray(lengths)[:, None, None]).astype(
            jnp.float32)                                             # (B,S,1)
        return x, mask

    # Case 1: toy shapes, automatic tiling (single grid step).
    x1, m1 = make_inputs(k_x1, 2, 8, [6, 4])
    out1 = jax.block_until_ready(
        readout_forward(x1, m1, att_weight, emb_weight, att_bias, emb_bias))
    ref1 = readout_reference(x1, m1, att_weight, emb_weight, att_bias,
                             emb_bias)
    assert out1.shape == (2, D)
    assert jnp.allclose(out1, ref1, atol=1e-4, rtol=1e-4), (
        f"case1 mismatch: max abs err {jnp.max(jnp.abs(out1 - ref1))}")

    # Case 2: exercises batch padding (3 -> 8), node padding (20 -> 24) and
    # multi-chunk S accumulation (grid = (1, 3), ts = 8).
    x2, m2 = make_inputs(k_x2, 3, 20, [18, 9, 1])
    out2 = jax.block_until_ready(
        readout_forward(x2, m2, att_weight, emb_weight, att_bias, emb_bias,
                        tiles=(8, 8)))
    ref2 = readout_reference(x2, m2, att_weight, emb_weight, att_bias,
                             emb_bias)
    assert out2.shape == (3, D)
    assert jnp.allclose(out2, ref2, atol=1e-4, rtol=1e-4), (
        f"case2 mismatch: max abs err {jnp.max(jnp.abs(out2 - ref2))}")

    # Case 3: bf16 MXU operands with f32 accumulation (production fast path).
    out3 = jax.block_until_ready(
        readout_forward(x1, m1, att_weight, emb_weight, att_bias, emb_bias,
                        compute_dtype=jnp.bfloat16))
    assert out3.shape == (2, D)
    assert jnp.allclose(out3, ref1, atol=1e-1, rtol=1e-1), (
        f"case3 (bf16) mismatch: max abs err {jnp.max(jnp.abs(out3 - ref1))}")

    print("KERNEL_OK")
</pallas_src>

<mosaic_0001>
module attributes {stable_mosaic.version = 11 : i64} {
  func.func @readout_kernel(%arg0: i32, %arg1: i32, %arg2: memref<2x8x32xf32, #tpu.memory_space<vmem>>, %arg3: memref<2x8x1xf32, #tpu.memory_space<vmem>>, %arg4: memref<32x128xf32, #tpu.memory_space<vmem>>, %arg5: memref<1x128xf32, #tpu.memory_space<vmem>>, %arg6: memref<2x32xf32, #tpu.memory_space<vmem>>, %arg7: memref<2x32xf32, #tpu.memory_space<vmem>>, %arg8: memref<2x32xf32, #tpu.memory_space<vmem>>, %arg9: memref<2x1xf32, #tpu.memory_space<vmem>>) attributes {dimension_semantics = [#tpu.dimension_semantics<parallel>, #tpu.dimension_semantics<arbitrary>], iteration_bounds = array<i64: 1, 1>, scalar_prefetch = 0 : i64, scratch_operands = 3 : i64, tpu.core_type = #tpu.core_type<tc>, window_params = [{transform_indices = @transform_0, window_bounds = array<i64: 2, 8, 32>}, {transform_indices = @transform_1, window_bounds = array<i64: 2, 8, 1>}, {pipeline_mode = #tpu.pipeline_mode<synchronous>, transform_indices = @transform_2, window_bounds = array<i64: 32, 128>}, {pipeline_mode = #tpu.pipeline_mode<synchronous>, transform_indices = @transform_3, window_bounds = array<i64: 1, 128>}, {transform_indices = @transform_4, window_bounds = array<i64: 2, 32>}]} {
    %c0_i32 = arith.constant 0 : i32
    %0 = arith.cmpi eq, %arg1, %c0_i32 : i32
    %1 = arith.extui %0 : i1 to i32
    %c0_i32_0 = arith.constant 0 : i32
    %2 = arith.cmpi ne, %1, %c0_i32_0 : i32
    scf.if %2 {
      %cst_31 = arith.constant 0.000000e+00 : f32
      %46 = vector.broadcast %cst_31 : f32 to vector<2x32xf32>
      %c0_32 = arith.constant 0 : index
      %c0_33 = arith.constant 0 : index
      %47 = vector.load %arg7[%c0_32, %c0_33] : memref<2x32xf32, #tpu.memory_space<vmem>>, vector<2x32xf32>
      tpu.vector_store %arg7[%c0_32, %c0_33], %46 {strides = array<i32>} : memref<2x32xf32, #tpu.memory_space<vmem>>, vector<2x32xf32>,
      %cst_34 = arith.constant 0xFF800000 : f32
      %48 = vector.broadcast %cst_34 : f32 to vector<2x32xf32>
      %c0_35 = arith.constant 0 : index
      %c0_36 = arith.constant 0 : index
      %49 = vector.load %arg8[%c0_35, %c0_36] : memref<2x32xf32, #tpu.memory_space<vmem>>, vector<2x32xf32>
      tpu.vector_store %arg8[%c0_35, %c0_36], %48 {strides = array<i32>} : memref<2x32xf32, #tpu.memory_space<vmem>>, vector<2x32xf32>,
      %cst_37 = arith.constant 0.000000e+00 : f32
      %50 = vector.broadcast %cst_37 : f32 to vector<2x1xf32>
      %c0_38 = arith.constant 0 : index
      %c0_39 = arith.constant 0 : index
      %51 = vector.load %arg9[%c0_38, %c0_39] : memref<2x1xf32, #tpu.memory_space<vmem>>, vector<2x1xf32>
      tpu.vector_store %arg9[%c0_38, %c0_39], %50 {strides = array<i32>} : memref<2x1xf32, #tpu.memory_space<vmem>>, vector<2x1xf32>,
    } else {
    }
    %c0 = arith.constant 0 : index
    %c0_1 = arith.constant 0 : index
    %c0_2 = arith.constant 0 : index
    %3 = vector.load %arg2[%c0, %c0_1, %c0_2] : memref<2x8x32xf32, #tpu.memory_space<vmem>>, vector<2x8x32xf32>
    %4 = vector.shape_cast %3 : vector<2x8x32xf32> to vector<16x32xf32>
    %c0_3 = arith.constant 0 : index
    %c0_4 = arith.constant 0 : index
    %5 = vector.load %arg4[%c0_3, %c0_4] : memref<32x128xf32, #tpu.memory_space<vmem>>, vector<32x128xf32>
    %cst = arith.constant dense<0.000000e+00> : vector<16x128xf32>
    %6 = tpu.matmul %4, %5, %cst {dimension_numbers = #tpu.dot_dimension_numbers<[1], [0], [0], [1], [0, 0, 1, 1], [], []>} : vector<16x32xf32>, vector<32x128xf32>, vector<16x128xf32> -> vector<16x128xf32>
    %c0_5 = arith.constant 0 : index
    %c0_6 = arith.constant 0 : index
    %7 = vector.load %arg5[%c0_5, %c0_6] : memref<1x128xf32, #tpu.memory_space<vmem>>, vector<1x128xf32>
    %8 = vector.broadcast %7 : vector<1x128xf32> to vector<16x128xf32>
    %9 = arith.addf %6, %8 : vector<16x128xf32>
    %10 = vector.extract_strided_slice %9 {offsets = [0, 0], sizes = [16, 32], strides = [1, 1]} : vector<16x128xf32> to vector<16x32xf32>
    %cst_7 = arith.constant 0.000000e+00 : f32
    %11 = vector.broadcast %cst_7 : f32 to vector<16x32xf32>
    %12 = arith.maximumf %10, %11 : vector<16x32xf32>
    %13 = vector.shape_cast %12 : vector<16x32xf32> to vector<2x8x32xf32>
    %14 = vector.extract_strided_slice %9 {offsets = [0, 32], sizes = [16, 1], strides = [1, 1]} : vector<16x128xf32> to vector<16x1xf32>
    %15 = arith.negf %14 : vector<16x1xf32>
    %16 = math.exp %15 : vector<16x1xf32>
    %cst_8 = arith.constant 1.000000e+00 : f32
    %17 = vector.broadcast %cst_8 : f32 to vector<16x1xf32>
    %18 = arith.addf %17, %16 : vector<16x1xf32>
    %19 = arith.divf %17, %18 : vector<16x1xf32>
    %20 = vector.shape_cast %19 : vector<16x1xf32> to vector<2x8x1xf32>
    %c0_9 = arith.constant 0 : index
    %c0_10 = arith.constant 0 : index
    %c0_11 = arith.constant 0 : index
    %21 = vector.load %arg3[%c0_9, %c0_10, %c0_11] : memref<2x8x1xf32, #tpu.memory_space<vmem>>, vector<2x8x1xf32>
    %22 = arith.mulf %21, %20 : vector<2x8x1xf32>
    %23 = vector.broadcast %22 : vector<2x8x1xf32> to vector<2x8x32xf32>
    %24 = arith.mulf %23, %13 : vector<2x8x32xf32>
    %c0_12 = arith.constant 0 : index
    %c0_13 = arith.constant 0 : index
    %25 = vector.load %arg7[%c0_12, %c0_13] : memref<2x32xf32, #tpu.memory_space<vmem>>, vector<2x32xf32>
    %cst_14 = arith.constant dense<0.000000e+00> : vector<2x32xf32>
    %26 = vector.multi_reduction <add>, %24, %cst_14 [1] : vector<2x8x32xf32> to vector<2x32xf32>
    %27 = arith.addf %25, %26 : vector<2x32xf32>
    %c0_15 = arith.constant 0 : index
    %c0_16 = arith.constant 0 : index
    %28 = vector.load %arg7[%c0_15, %c0_16] : memref<2x32xf32, #tpu.memory_space<vmem>>, vector<2x32xf32>
    tpu.vector_store %arg7[%c0_15, %c0_16], %27 {strides = array<i32>} : memref<2x32xf32, #tpu.memory_space<vmem>>, vector<2x32xf32>,
    %c0_17 = arith.constant 0 : index
    %c0_18 = arith.constant 0 : index
    %29 = vector.load %arg8[%c0_17, %c0_18] : memref<2x32xf32, #tpu.memory_space<vmem>>, vector<2x32xf32>
    %cst_19 = arith.constant 1.000000e+00 : f32
    %30 = vector.broadcast %cst_19 : f32 to vector<2x8x1xf32>
    %31 = arith.subf %21, %30 : vector<2x8x1xf32>
    %cst_20 = arith.constant 1.000000e+09 : f32
    %32 = vector.broadcast %cst_20 : f32 to vector<2x8x1xf32>
    %33 = arith.mulf %31, %32 : vector<2x8x1xf32>
    %34 = vector.broadcast %33 : vector<2x8x1xf32> to vector<2x8x32xf32>
    %35 = arith.addf %24, %34 : vector<2x8x32xf32>
    %cst_21 = arith.constant dense<0xFF800000> : vector<2x32xf32>
    %36 = vector.multi_reduction <maximumf>, %35, %cst_21 [1] : vector<2x8x32xf32> to vector<2x32xf32>
    %37 = arith.maximumf %29, %36 : vector<2x32xf32>
    %c0_22 = arith.constant 0 : index
    %c0_23 = arith.constant 0 : index
    %38 = vector.load %arg8[%c0_22, %c0_23] : memref<2x32xf32, #tpu.memory_space<vmem>>, vector<2x32xf32>
    tpu.vector_store %arg8[%c0_22, %c0_23], %37 {strides = array<i32>} : memref<2x32xf32, #tpu.memory_space<vmem>>, vector<2x32xf32>,
    %c0_24 = arith.constant 0 : index
    %c0_25 = arith.constant 0 : index
    %39 = vector.load %arg9[%c0_24, %c0_25] : memref<2x1xf32, #tpu.memory_space<vmem>>, vector<2x1xf32>
    %cst_26 = arith.constant dense<0.000000e+00> : vector<2x1xf32>
    %40 = vector.multi_reduction <add>, %21, %cst_26 [1] : vector<2x8x1xf32> to vector<2x1xf32>
    %41 = arith.addf %39, %40 : vector<2x1xf32>
    %c0_27 = arith.constant 0 : index
    %c0_28 = arith.constant 0 : index
    %42 = vector.load %arg9[%c0_27, %c0_28] : memref<2x1xf32, #tpu.memory_space<vmem>>, vector<2x1xf32>
    tpu.vector_store %arg9[%c0_27, %c0_28], %41 {strides = array<i32>} : memref<2x1xf32, #tpu.memory_space<vmem>>, vector<2x1xf32>,
    %c0_i32_29 = arith.constant 0 : i32
    %43 = arith.cmpi eq, %arg1, %c0_i32_29 : i32
    %44 = arith.extui %43 : i1 to i32
    %c0_i32_30 = arith.constant 0 : i32
    %45 = arith.cmpi ne, %44, %c0_i32_30 : i32
    scf.if %45 {
      %c0_31 = arith.constant 0 : index
      %c0_32 = arith.constant 0 : index
      %46 = vector.load %arg7[%c0_31, %c0_32] : memref<2x32xf32, #tpu.memory_space<vmem>>, vector<2x32xf32>
      %c0_33 = arith.constant 0 : index
      %c0_34 = arith.constant 0 : index
      %47 = vector.load %arg9[%c0_33, %c0_34] : memref<2x1xf32, #tpu.memory_space<vmem>>, vector<2x1xf32>
      %48 = vector.broadcast %47 : vector<2x1xf32> to vector<2x32xf32>
      %49 = arith.divf %46, %48 : vector<2x32xf32>
      %c0_35 = arith.constant 0 : index
      %c0_36 = arith.constant 0 : index
      %50 = vector.load %arg8[%c0_35, %c0_36] : memref<2x32xf32, #tpu.memory_space<vmem>>, vector<2x32xf32>
      %51 = arith.addf %49, %50 : vector<2x32xf32>
      %c0_37 = arith.constant 0 : index
      %c0_38 = arith.constant 0 : index
      %52 = vector.load %arg6[%c0_37, %c0_38] : memref<2x32xf32, #tpu.memory_space<vmem>>, vector<2x32xf32>
      tpu.vector_store %arg6[%c0_37, %c0_38], %51 {strides = array<i32>} : memref<2x32xf32, #tpu.memory_space<vmem>>, vector<2x32xf32>,
    } else {
    }
    return
  }
  func.func @transform_0(%arg0: i32, %arg1: i32) -> (i32, i32, i32) {
    %c0_i32 = arith.constant 0 : i32
    %c0_i32_0 = arith.constant 0 : i32
    return %arg0, %arg1, %c0_i32 : i32, i32, i32
  }
  func.func @transform_1(%arg0: i32, %arg1: i32) -> (i32, i32, i32) {
    %c0_i32 = arith.constant 0 : i32
    %c0_i32_0 = arith.constant 0 : i32
    return %arg0, %arg1, %c0_i32 : i32, i32, i32
  }
  func.func @transform_2(%arg0: i32, %arg1: i32) -> (i32, i32) {
    %c0_i32 = arith.constant 0 : i32
    %c0_i32_0 = arith.constant 0 : i32
    %c0_i32_1 = arith.constant 0 : i32
    return %c0_i32, %c0_i32_0 : i32, i32
  }
  func.func @transform_3(%arg0: i32, %arg1: i32) -> (i32, i32) {
    %c0_i32 = arith.constant 0 : i32
    %c0_i32_0 = arith.constant 0 : i32
    %c0_i32_1 = arith.constant 0 : i32
    return %c0_i32, %c0_i32_0 : i32, i32
  }
  func.func @transform_4(%arg0: i32, %arg1: i32) -> (i32, i32) {
    %c0_i32 = arith.constant 0 : i32
    %c0_i32_0 = arith.constant 0 : i32
    return %arg0, %c0_i32 : i32, i32
  }
}

</mosaic_0001>

<llo_original>
// kernel: tpu_custom_call.1
$region0: #{tpu_custom_call.1}
  #allocation0 [shape = 'u32[]', space=smem, size = 0x4, offset = 0x4, fixed_abs, tag = 'smem constant byte address 0x4 - core index']
  #allocation1 [shape = 'u32[144,128]{1,0:T(1,128)}', space=vmem, size = 0x12000, scoped, tag = 'internal scratch']
  #allocation2 [shape = 'f32[2,32]{1,0:T(2,128)}', space=vmem, size = 0x400, scoped, tag = 'scratch operand']
  #allocation3 [shape = 'f32[2,32]{1,0:T(2,128)}', space=vmem, size = 0x400, scoped, tag = 'scratch operand']
  #allocation4 [shape = 'f32[2,1]{1,0:T(2,128)}', space=vmem, size = 0x400, scoped, tag = 'scratch operand']
  %s0 = inlined_call_operand.vmem [shape: f32[2,8,32], index: 0, kind: input, shape index: {}]
  %s1 = inlined_call_operand.vmem [shape: f32[2,8,1], index: 1, kind: input, shape index: {}]
  %s2 = inlined_call_operand.hbm [shape: f32[32,128], index: 2, kind: input, shape index: {}]
  %s3 = inlined_call_operand.vmem [shape: f32[1,128], index: 3, kind: input, shape index: {}]
  %s4 = inlined_call_operand.hbm [shape: f32[2,32], index: 4, kind: output, shape index: {}]
  %s5 = sld [smem:[#allocation0]]
  $region38: #{tpu_custom_call.1} parent=0
    _
  %s7 = ssub.s32 1, %s5
  %s8 = scalar_select 0, %s7, %s5
  $region1: #{tpu_custom_call.1} parent=0
    #allocation5 [shape = 'u8[16384]{0}', space=vmem, size = 0x4000, scoped, tag = 'input window, operand 2, single buffered']
    #allocation6 [shape = 's32[1]{0}', space=sflag, size = 0x4, scoped, tag = 'scoped memory for tpu_custom_call.1']
    #allocation7 [shape = 's32[1]{0}', space=sflag, size = 0x4, scoped, tag = 'scoped memory for tpu_custom_call.1']
    #allocation8 [shape = 'u8[1024]{0}', space=vmem, size = 0x400, scoped, tag = 'output window, operand 0, single buffered']
    %9 = vsyncpa [#allocation6], 0
    %10 = vsyncpa [#allocation7], 0
    // Predicated region
    $region2: #{tpu_custom_call.1} parent=1 // pred_check
      _
    $region3: #{tpu_custom_call.1} parent=1 // pred_check_branch
      %12 = sbr.rel (0) target = $region5
    $region4: #{tpu_custom_call.1} parent=1 // pred_region
      _
    $region5: #{tpu_custom_call.1} parent=1 // pred_fallthru
      _
    // Predicated region
    $region6: #{tpu_custom_call.1} parent=1 // pred_check
      _
    $region7: #{tpu_custom_call.1} parent=1 // pred_check_branch
      %14 = sbr.rel (0) target = $region9
    $region8: #{tpu_custom_call.1} parent=1 // pred_region
      _
    $region9: #{tpu_custom_call.1} parent=1 // pred_fallthru
      _
    // Predicated region
    $region10: #{tpu_custom_call.1} parent=1 // pred_check
      _
    $region11: #{tpu_custom_call.1} parent=1 // pred_check_branch
      %16 = sbr.rel (0) target = $region13
    $region12: #{tpu_custom_call.1} parent=1 // pred_region
      %s18 = ssub.s32 512, 512
      %19 = vsyncadd [#allocation6], %s18
      %s20 = sshll.u32 [#allocation5], 4
      %s21 = int_to_ptr.vmem [resolvable:$true] %s20
      %26 = dma.hbm_to_vmem [thread:$0]  %s2, 512, %s21, [#allocation6], 128, 128, 8
    $region13: #{tpu_custom_call.1} parent=1 // pred_fallthru
      _
    // Predicated region
    $region14: #{tpu_custom_call.1} parent=1 // pred_check
      _
    $region15: #{tpu_custom_call.1} parent=1 // pred_check_branch
      %28 = sbr.rel (0) target = $region17
    $region16: #{tpu_custom_call.1} parent=1 // pred_region
      _
    $region17: #{tpu_custom_call.1} parent=1 // pred_fallthru
      _
    // Predicated region
    $region18: #{tpu_custom_call.1} parent=1 // pred_check
      _
    $region19: #{tpu_custom_call.1} parent=1 // pred_check_branch
      %30 = sbr.rel (0) target = $region21
    $region20: #{tpu_custom_call.1} parent=1 // pred_region
      %31 = dma.done [#allocation6], 512
    $region21: #{tpu_custom_call.1} parent=1 // pred_fallthru
      _
    %p32 = scmp.eq.s32.totalorder 0, 0
    // Predicated region
    $region22: #{tpu_custom_call.1} parent=1 // pred_check
      %p33 = pneg %p32
    $region23: #{tpu_custom_call.1} parent=1 // pred_check_branch
      %35 = sbr.rel (%p33) target = $region25
    $region24: #{tpu_custom_call.1} parent=1 // pred_region
      %vm36 = vcmask 254976
      %37 = vst.msk [vmem:[#allocation2] sm:$0x3] %vm36, 0.0
      %38 = vst.msk [vmem:[#allocation3] sm:$0x3] %vm36, -inf
      %vm39 = vcmask 1024
      %40 = vst.msk [vmem:[#allocation4] sm:$0x3] %vm39, 0.0
    $region25: #{tpu_custom_call.1} parent=1 // pred_fallthru
      _
    %v41 = vld [vmem:[%s0] sm:$0xff]
    %v42 = vld [vmem:[%s0 + $0x8] sm:$0xff]
    %v43 = vld [vmem:[#allocation5] sm:$0xff]
    %v44 = vld [vmem:[#allocation5 + $0x8] sm:$0xff]
    %v45 = vld [vmem:[#allocation5 + $0x10] sm:$0xff]
    %v46 = vld [vmem:[#allocation5 + $0x18] sm:$0xff]
    %v47 = vld [vmem:[%s3] sm:$0x1]
    %v49 = vlaneseq
    %v50 = vshrl.u32 %v49, 7
    %v51 = vsub.s32 0, %v50
    %v52 = vrot.slane %v47, %v51
    %vm54 = vcmask 261120
    %v56 = vsel %vm54, %v41, 0
    %v59 = vsel %vm54, %v42, 0
    %61 = vmatprep.subr.mxu0 0.0
    %62 = vmatpush1.msra.mxu0 %v43
    %63 = vmatprep.subr.mxu0 0.0
    %64 = vmatpush1.msra.mxu0 %v44
    %65 = vmatprep.subr.mxu0 0.0
    %66 = vmatpush1.msra.mxu0 %v45
    %67 = vmatprep.subr.mxu0 0.0
    %68 = vmatpush1.msra.mxu0 %v46
    %69 = vmatprep.subr.mxu0 0.0
    %70 = vmatpush1.msra.mxu0 0.0
    %71 = vmatprep.subr.mxu0 0.0
    %72 = vmatpush1.msra.mxu0 0.0
    %73 = vmatprep.subr.mxu0 0.0
    %74 = vmatpush1.msra.mxu0 0.0
    %75 = vmatprep.subr.mxu0 0.0
    %76 = vmatpush1.msra.mxu0 0.0
    %77 = vmatprep.subr.mxu0 0.0
    %78 = vmatpush1.msra.mxu0 0.0
    %79 = vmatprep.subr.mxu0 0.0
    %80 = vmatpush1.msra.mxu0 0.0
    %81 = vmatprep.subr.mxu0 0.0
    %82 = vmatpush1.msra.mxu0 0.0
    %83 = vmatprep.subr.mxu0 0.0
    %84 = vmatpush1.msra.mxu0 0.0
    %85 = vmatprep.subr.mxu0 0.0
    %86 = vmatpush1.msra.mxu0 0.0
    %87 = vmatprep.subr.mxu0 0.0
    %88 = vmatpush1.msra.mxu0 0.0
    %89 = vmatprep.subr.mxu0 0.0
    %90 = vmatpush1.msra.mxu0 0.0
    %91 = vmatprep.subr.mxu0 0.0
    %92 = vmatpush1.msra.mxu0 0.0
    %93 = vmatprep.subr.mxu0 0.0
    %94 = vmatpush1.msra.mxu0 0.0
    %95 = vmatprep.subr.mxu0 0.0
    %96 = vmatpush1.msra.mxu0 0.0
    %97 = vmatprep.subr.mxu0 0.0
    %98 = vmatpush1.msra.mxu0 0.0
    %99 = vmatprep.subr.mxu0 0.0
    %100 = vmatpush1.msra.mxu0 0.0
    %101 = vmatprep.subr.mxu0 0.0
    %102 = vmatpush1.msra.mxu0 0.0
    %103 = vmatprep.subr.mxu0 0.0
    %104 = vmatpush1.msra.mxu0 0.0
    %105 = vmatprep.subr.mxu0 0.0
    %106 = vmatpush1.msra.mxu0 0.0
    %107 = vmatprep.subr.mxu0 0.0
    %108 = vmatpush1.msra.mxu0 0.0
    %109 = vmatprep.subr.mxu0 0.0
    %110 = vmatpush1.msra.mxu0 0.0
    %111 = vmatprep.subr.mxu0 0.0
    %112 = vmatpush1.msra.mxu0 0.0
    %113 = vmatprep.subr.mxu0 0.0
    %114 = vmatpush1.msra.mxu0 0.0
    %115 = vmatprep.subr.mxu0 0.0
    %116 = vmatpush1.msra.mxu0 0.0
    %117 = vmatprep.subr.mxu0 0.0
    %118 = vmatpush1.msra.mxu0 0.0
    %119 = vmatprep.subr.mxu0 0.0
    %120 = vmatpush1.msra.mxu0 0.0
    %121 = vmatprep.subr.mxu0 0.0
    %122 = vmatpush1.msra.mxu0 0.0
    %123 = vmatprep.subr.mxu0 0.0
    %124 = vmatpush1.msra.mxu0 0.0
    %125 = vmatprep.mubr.f32.mxu0 0.0
    %126 = vmatmul.mubr.f32.gmra.mrb[0].mxu0 %v56
    %v127 = vpop.f32.mrb[0].mxu0
    %v128 = vadd.f32 %v52, %v127
    %v129 = vpop.f32.mrb[0].mxu0
    %130 = vmatprep.mubr.f32.mxu0 0.0
    %131 = vmatmul.mubr.f32.gmra.mrb[0].mxu0 %v59
    %v132 = vpop.f32.mrb[0].mxu0
    %v133 = vadd.f32 %v52, %v132
    %v134 = vpop.f32.mrb[0].mxu0
    %135 = vdwg.mxu0
    %v136 = vmax.f32 %v128, 0.0
    %v137 = vmax.f32 %v133, 0.0
    %v138 = vxor.u32 %v128, 2147483648
    %v139 = vxor.u32 %v133, 2147483648
    %v140 = vmul.f32 %v138, 1.442695
    %v141 = vpow.pop %v140
    %v142 = vmul.f32 %v139, 1.442695
    %v143 = vpow.pop %v142
    %v144 = vadd.f32 %v141, 1.0
    %v145 = vadd.f32 %v143, 1.0
    %v146 = vrcp.pop %v144
    %v147 = vmul.f32 1.0, %v146
    %v148 = vrcp.pop %v145
    %v149 = vmul.f32 1.0, %v148
    %v150 = vld [vmem:[%s1] sm:$0xff]
    %v151 = vld [vmem:[%s1 + $0x8] sm:$0xff]
    %154 = vrot.lane.b32.xlu0 %v147, 96
    %v155 = vpop.permute.xlu0 %154
    %156 = vrot.lane.b32.xlu0 %v149, 96
    %v157 = vpop.permute.xlu0 %156
    %v160 = vmul.f32 %v150, %v155
    %v161 = vmul.f32 %v151, %v157
    %163 = vset.pattern.permute.xlu0 0
    %164 = vperm.xlu0 %163, %v160
    %v165 = vpop.permute.xlu0 %164
    %168 = vset.pattern.permute.xlu0 0
    %169 = vperm.xlu0 %168, %v161
    %v170 = vpop.permute.xlu0 %169
    %v172 = vmul.f32 %v165, %v136
    %v173 = vmul.f32 %v170, %v137
    %v174 = vld [vmem:[#allocation2] sm:$0x3]
    %v175 = vsel %vm54, %v172, 0.0
    %v176 = vrot.slane %v175, 4
    %v177 = vadd.f32 %v175, %v176
    %v178 = vrot.slane %v177, 2
    %v179 = vadd.f32 %v177, %v178
    %v180 = vrot.slane %v179, 1
    %v181 = vadd.f32 %v179, %v180
    %v182 = vsel %vm54, %v173, 0.0
    %v183 = vrot.slane %v182, 4
    %v184 = vadd.f32 %v182, %v183
    %v185 = vrot.slane %v184, 2
    %v186 = vadd.f32 %v184, %v185
    %v187 = vrot.slane %v186, 1
    %v188 = vadd.f32 %v186, %v187
    %vm191 = vcmask 1041409
    %v192 = vsel %vm191, %v188, %v181
    %v194 = vadd.f32 %v174, %v192
    %vm195 = vcmask 254976
    %196 = vst.msk [vmem:[#allocation2] sm:$0x3] %vm195, %v194
    %v197 = vld [vmem:[#allocation3] sm:$0x3]
    %v198 = vsub.f32 %v150, 1.0
    %v199 = vsub.f32 %v151, 1.0
    %v200 = vmul.f32 %v198, 1e+09
    %v201 = vmul.f32 %v199, 1e+09
    %203 = vset.pattern.permute.xlu0 0
    %204 = vperm.xlu0 %203, %v200
    %v205 = vpop.permute.xlu0 %204
    %208 = vset.pattern.permute.xlu0 0
    %209 = vperm.xlu0 %208, %v201
    %v210 = vpop.permute.xlu0 %209
    %v212 = vadd.f32 %v172, %v205
    %v213 = vadd.f32 %v173, %v210
    %v214 = vsel %vm54, %v212, -inf
    %v215 = vrot.slane %v214, 4
    %v216 = vmax.f32 %v214, %v215
    %v217 = vrot.slane %v216, 2
    %v218 = vmax.f32 %v216, %v217
    %v219 = vrot.slane %v218, 1
    %v220 = vmax.f32 %v218, %v219
    %v221 = vsel %vm54, %v213, -inf
    %v222 = vrot.slane %v221, 4
    %v223 = vmax.f32 %v221, %v222
    %v224 = vrot.slane %v223, 2
    %v225 = vmax.f32 %v223, %v224
    %v226 = vrot.slane %v225, 1
    %v227 = vmax.f32 %v225, %v226
    %v230 = vsel %vm191, %v227, %v220
    %v232 = vmax.f32 %v197, %v230
    %233 = vst.msk [vmem:[#allocation3] sm:$0x3] %vm195, %v232
    %v234 = vld [vmem:[#allocation4] sm:$0x3]
    %vm235 = vcmask 7168
    %v236 = vsel %vm235, %v150, 0.0
    %v237 = vrot.slane %v236, 4
    %v238 = vadd.f32 %v236, %v237
    %v239 = vrot.slane %v238, 2
    %v240 = vadd.f32 %v238, %v239
    %v241 = vrot.slane %v240, 1
    %v242 = vadd.f32 %v240, %v241
    %v243 = vsel %vm235, %v151, 0.0
    %v244 = vrot.slane %v243, 4
    %v245 = vadd.f32 %v243, %v244
    %v246 = vrot.slane %v245, 2
    %v247 = vadd.f32 %v245, %v246
    %v248 = vrot.slane %v247, 1
    %v249 = vadd.f32 %v247, %v248
    %v252 = vsel %vm191, %v249, %v242
    %v254 = vadd.f32 %v234, %v252
    %vm255 = vcmask 1024
    %256 = vst.msk [vmem:[#allocation4] sm:$0x3] %vm255, %v254
    // Predicated region
    $region26: #{tpu_custom_call.1} parent=1 // pred_check
      %p257 = pneg %p32
    $region27: #{tpu_custom_call.1} parent=1 // pred_check_branch
      %259 = sbr.rel (%p257) target = $region29
    $region28: #{tpu_custom_call.1} parent=1 // pred_region
      %v260 = vld [vmem:[#allocation2] sm:$0x3]
      %v261 = vld [vmem:[#allocation4] sm:$0x3]
      %263 = vset.pattern.permute.xlu0 0
      %264 = vperm.xlu0 %263, %v261
      %v265 = vpop.permute.xlu0 %264
      %v267 = vrcp.pop %v265
      %v268 = vmul.f32 %v260, %v267
      %v269 = vld [vmem:[#allocation3] sm:$0x3]
      %v270 = vadd.f32 %v268, %v269
      %271 = vst.msk [vmem:[#allocation8] sm:$0x3] %vm195, %v270
    $region29: #{tpu_custom_call.1} parent=1 // pred_fallthru
      _
    // Predicated region
    $region30: #{tpu_custom_call.1} parent=1 // pred_check
      _
    $region31: #{tpu_custom_call.1} parent=1 // pred_check_branch
      %273 = sbr.rel (0) target = $region33
    $region32: #{tpu_custom_call.1} parent=1 // pred_region
      %s275 = ssub.s32 32, 32
      %276 = vsyncadd [#allocation7], %s275
      %s278 = sshll.u32 [#allocation8], 4
      %s279 = int_to_ptr.vmem [resolvable:$true] %s278
      %281 = dma.vmem_to_hbm [thread:$0]  %s279, 32, %s4, [#allocation7]
    $region33: #{tpu_custom_call.1} parent=1 // pred_fallthru
      _
    // Predicated region
    $region34: #{tpu_custom_call.1} parent=1 // pred_check
      _
    $region35: #{tpu_custom_call.1} parent=1 // pred_check_branch
      %283 = sbr.rel (0) target = $region37
    $region36: #{tpu_custom_call.1} parent=1 // pred_region
      %284 = dma.done [#allocation7], 32
    $region37: #{tpu_custom_call.1} parent=1 // pred_fallthru
      _
    %285 = vsyncpa [#allocation6], 1
    %286 = vsyncpa [#allocation7], 1

</llo_original>
